<compile_context>
chip_gen: v5e
topology: v5e:2x2
jax: 0.10.0
libtpu: 0.0.40
codegen_flags: <defaults>
</compile_context>

<pallas_src>
import functools

import jax
import jax.numpy as jnp
from jax.experimental import pallas as pl
from jax.experimental.pallas import tpu as pltpu


def _round_up(n, m):
    return ((n + m - 1) // m) * m


def _pick_tk(h4, cap=1024):
    """Largest K-tile <= cap that is 128-aligned and divides 4H (else full)."""
    if h4 % 128 != 0:
        return h4
    tk = min(cap, h4)
    while h4 % tk != 0:
        tk -= 128
    return tk


def _head_kernel(x_ref, w1_ref, b1_ref, w2_ref, b2_ref, w3_ref, b3_ref,
                 out_ref, acc_ref):
    """One K-tile of:  relu(x@W1+b1) @ W2  accumulated; finalize with b2/relu/W3."""
    k = pl.program_id(0)

    @pl.when(k == 0)
    def _init():
        acc_ref[...] = jnp.zeros_like(acc_ref)

    # dense_1 tile: h1_k = relu(x @ W1[:, kblk] + b1[kblk])
    h1 = jnp.dot(x_ref[...], w1_ref[...], preferred_element_type=jnp.float32)
    h1 = jnp.maximum(h1 + b1_ref[...], 0.0)
    # dropout -> identity (eval mode)

    # dense_2 partial accumulate over the 4H axis: acc += h1_k @ W2[kblk, :]
    acc_ref[...] += jnp.dot(h1.astype(w2_ref.dtype), w2_ref[...],
                            preferred_element_type=jnp.float32)

    @pl.when(k == pl.num_programs(0) - 1)
    def _finalize():
        h2 = jnp.maximum(acc_ref[...] + b2_ref[...], 0.0)
        # dropout -> identity (eval mode)
        logits = jnp.dot(h2.astype(w3_ref.dtype), w3_ref[...],
                         preferred_element_type=jnp.float32) + b3_ref[...]
        out_ref[...] = logits.astype(out_ref.dtype)


def prepare_params(params):
    """One-time (outside jit) param prep: lane-pad W3/b3 to a multiple of 128.

    Keeps per-call HBM traffic equal to the true weight bytes (no per-call
    pad/convert ops feeding the custom call).
    """
    w3 = params["w3"]
    b3 = params["b3"]
    num_labels = w3.shape[1]
    l_pad = _round_up(num_labels, 128)
    prepped = dict(params)
    prepped["w3"] = jnp.pad(w3, ((0, 0), (0, l_pad - num_labels)))
    prepped["b3"] = jnp.pad(b3, ((0, 0), (0, l_pad - num_labels)))
    return prepped


def roberta_classification_head(features, hidden_states_m2, params, *, num_labels):
    """features, hidden_states_m2: [B, S, H].  params: output of prepare_params.

    Returns logits [B, num_labels].
    """
    B, _, H = features.shape
    w1, b1, w2, b2, w3_p, b3_p = (params["w1"], params["b1"], params["w2"],
                                  params["b2"], params["w3"], params["b3"])
    H2, H4 = w1.shape            # 2*H (module "hidden_size"), 4*H
    L_pad = w3_p.shape[1]
    assert H2 == 2 * H

    compute_dtype = w1.dtype     # bf16 weight/activation streaming
    B_pad = _round_up(max(B, 8), 8)          # sublane-aligned M

    # torch.cat((features[:, 0, :], hidden_states[-2][:, 0, :]), dim=1).
    # Tiny (~32 KiB even at RoBERTa-large), so the wrapper-side concat/pad/cast
    # is negligible; padded batch rows are zeros and sliced off below.
    x = jnp.concatenate([features[:, 0, :], hidden_states_m2[:, 0, :]], axis=1)
    x_p = jnp.pad(x.astype(compute_dtype), ((0, B_pad - B), (0, 0)))

    TK = _pick_tk(H4)            # 1024 at RoBERTa-large; full (=4H) when tiny
    grid = (H4 // TK,)

    flops = 2 * B_pad * (H2 * H4 + H4 * H2 + H2 * L_pad)
    bytes_accessed = sum(int(a.size) * a.dtype.itemsize for a in
                         (x_p, w1, b1, w2, b2, w3_p, b3_p))
    bytes_accessed += B_pad * L_pad * 4

    out = pl.pallas_call(
        _head_kernel,
        out_shape=jax.ShapeDtypeStruct((B_pad, L_pad), jnp.float32),
        grid_spec=pltpu.PrefetchScalarGridSpec(
            num_scalar_prefetch=0,
            grid=grid,
            in_specs=[
                pl.BlockSpec((B_pad, H2),  lambda k: (0, 0)),   # x  (resident)
                pl.BlockSpec((H2, TK),     lambda k: (0, k)),   # W1, K-tiled
                pl.BlockSpec((1, TK),      lambda k: (0, k)),   # b1, K-tiled
                pl.BlockSpec((TK, H2),     lambda k: (k, 0)),   # W2, K-tiled
                pl.BlockSpec((1, H2),      lambda k: (0, 0)),   # b2 (resident)
                pl.BlockSpec((H2, L_pad),  lambda k: (0, 0)),   # W3 (resident)
                pl.BlockSpec((1, L_pad),   lambda k: (0, 0)),   # b3 (resident)
            ],
            out_specs=pl.BlockSpec((B_pad, L_pad), lambda k: (0, 0)),
            scratch_shapes=[pltpu.VMEM((B_pad, H2), jnp.float32)],  # h2 accumulator
        ),
        compiler_params=pltpu.CompilerParams(
            dimension_semantics=("arbitrary",),        # reduction axis
            vmem_limit_bytes=40 * 1024 * 1024,         # TK=1024 fits all gens
        ),
        cost_estimate=pl.CostEstimate(
            flops=flops, transcendentals=0, bytes_accessed=bytes_accessed),
    )(x_p, w1, b1, w2, b2, w3_p, b3_p)

    return out[:B, :num_labels]


def init_params(key, hidden_size, num_labels, weight_dtype=jnp.bfloat16):
    """Synthetic params matching the PyTorch module shapes.

    PyTorch: dense_1: Linear(2H -> 4H), dense_2: Linear(4H -> 2H),
             out_proj: Linear(2H -> num_labels).  Stored as [in, out]
             (== PyTorch weight.T).  Weights bf16, biases f32.
    """
    H2 = hidden_size * 2
    H4 = 2 * H2
    ks = jax.random.split(key, 6)
    scale = 0.02

    def w(k, shape):
        return (scale * jax.random.normal(k, shape, jnp.float32)).astype(weight_dtype)

    return {
        "w1": w(ks[0], (H2, H4)),
        "b1": scale * jax.random.normal(ks[1], (1, H4), jnp.float32),
        "w2": w(ks[2], (H4, H2)),
        "b2": scale * jax.random.normal(ks[3], (1, H2), jnp.float32),
        "w3": w(ks[4], (H2, num_labels)),
        "b3": scale * jax.random.normal(ks[5], (1, num_labels), jnp.float32),
    }


if __name__ == "__main__":
    key = jax.random.PRNGKey(0)
    k_feat, k_hs, k_param = jax.random.split(key, 3)

    batch, seq, hidden = 2, 8, 32
    num_labels = 3

    features = jax.random.normal(k_feat, (batch, seq, hidden), jnp.float32)
    hidden_states_m2 = jax.random.normal(k_hs, (batch, seq, hidden), jnp.float32)

    params = init_params(k_param, hidden, num_labels)
    prepped = prepare_params(params)          # one-time pad/cast, outside jit

    head = jax.jit(roberta_classification_head, static_argnames=("num_labels",))
    logits = head(features, hidden_states_m2, prepped, num_labels=num_labels)
    jax.block_until_ready(logits)

    # Pure-JAX reference using the same (bf16) parameters and cast points.
    x = jnp.concatenate([features[:, 0, :], hidden_states_m2[:, 0, :]], axis=1)
    x = x.astype(params["w1"].dtype)
    h1 = jnp.maximum(
        jnp.dot(x, params["w1"], preferred_element_type=jnp.float32)
        + params["b1"], 0.0)
    h2 = jnp.maximum(
        jnp.dot(h1.astype(params["w2"].dtype), params["w2"],
                preferred_element_type=jnp.float32) + params["b2"], 0.0)
    ref = jnp.dot(h2.astype(params["w3"].dtype), params["w3"],
                  preferred_element_type=jnp.float32) + params["b3"]

    assert logits.shape == (batch, num_labels)
    assert jnp.allclose(logits, ref, atol=2e-2, rtol=2e-2), "mismatch vs reference"

    print("KERNEL_OK")
</pallas_src>

<mosaic_0001>
module attributes {stable_mosaic.version = 11 : i64} {
  func.func @_head_kernel(%arg0: i32, %arg1: memref<8x64xbf16, #tpu.memory_space<vmem>>, %arg2: memref<64x128xbf16, #tpu.memory_space<vmem>>, %arg3: memref<1x128xf32, #tpu.memory_space<vmem>>, %arg4: memref<128x64xbf16, #tpu.memory_space<vmem>>, %arg5: memref<1x64xf32, #tpu.memory_space<vmem>>, %arg6: memref<64x128xbf16, #tpu.memory_space<vmem>>, %arg7: memref<1x128xf32, #tpu.memory_space<vmem>>, %arg8: memref<8x128xf32, #tpu.memory_space<vmem>>, %arg9: memref<8x64xf32, #tpu.memory_space<vmem>>) attributes {dimension_semantics = [#tpu.dimension_semantics<arbitrary>], iteration_bounds = array<i64: 1>, scalar_prefetch = 0 : i64, scratch_operands = 1 : i64, tpu.core_type = #tpu.core_type<tc>, window_params = [{pipeline_mode = #tpu.pipeline_mode<synchronous>, transform_indices = @transform_0, window_bounds = array<i64: 8, 64>}, {transform_indices = @transform_1, window_bounds = array<i64: 64, 128>}, {transform_indices = @transform_2, window_bounds = array<i64: 1, 128>}, {transform_indices = @transform_3, window_bounds = array<i64: 128, 64>}, {pipeline_mode = #tpu.pipeline_mode<synchronous>, transform_indices = @transform_4, window_bounds = array<i64: 1, 64>}, {pipeline_mode = #tpu.pipeline_mode<synchronous>, transform_indices = @transform_5, window_bounds = array<i64: 64, 128>}, {pipeline_mode = #tpu.pipeline_mode<synchronous>, transform_indices = @transform_6, window_bounds = array<i64: 1, 128>}, {pipeline_mode = #tpu.pipeline_mode<synchronous>, transform_indices = @transform_7, window_bounds = array<i64: 8, 128>}]} {
    %c0_i32 = arith.constant 0 : i32
    %0 = arith.cmpi eq, %arg0, %c0_i32 : i32
    %1 = arith.extui %0 : i1 to i32
    %c0_i32_0 = arith.constant 0 : i32
    %2 = arith.cmpi ne, %1, %c0_i32_0 : i32
    scf.if %2 {
      %cst_16 = arith.constant 0.000000e+00 : f32
      %20 = vector.broadcast %cst_16 : f32 to vector<8x64xf32>
      %c0_17 = arith.constant 0 : index
      %c0_18 = arith.constant 0 : index
      %21 = vector.load %arg9[%c0_17, %c0_18] : memref<8x64xf32, #tpu.memory_space<vmem>>, vector<8x64xf32>
      tpu.vector_store %arg9[%c0_17, %c0_18], %20 {strides = array<i32>} : memref<8x64xf32, #tpu.memory_space<vmem>>, vector<8x64xf32>,
    } else {
    }
    %c0 = arith.constant 0 : index
    %c0_1 = arith.constant 0 : index
    %3 = vector.load %arg1[%c0, %c0_1] : memref<8x64xbf16, #tpu.memory_space<vmem>>, vector<8x64xbf16>
    %c0_2 = arith.constant 0 : index
    %c0_3 = arith.constant 0 : index
    %4 = vector.load %arg2[%c0_2, %c0_3] : memref<64x128xbf16, #tpu.memory_space<vmem>>, vector<64x128xbf16>
    %cst = arith.constant dense<0.000000e+00> : vector<8x128xf32>
    %5 = tpu.matmul %3, %4, %cst {dimension_numbers = #tpu.dot_dimension_numbers<[1], [0], [0], [1], [0, 0, 1, 1], [], []>} : vector<8x64xbf16>, vector<64x128xbf16>, vector<8x128xf32> -> vector<8x128xf32>
    %c0_4 = arith.constant 0 : index
    %c0_5 = arith.constant 0 : index
    %6 = vector.load %arg3[%c0_4, %c0_5] : memref<1x128xf32, #tpu.memory_space<vmem>>, vector<1x128xf32>
    %7 = vector.broadcast %6 : vector<1x128xf32> to vector<8x128xf32>
    %8 = arith.addf %5, %7 : vector<8x128xf32>
    %cst_6 = arith.constant 0.000000e+00 : f32
    %9 = vector.broadcast %cst_6 : f32 to vector<8x128xf32>
    %10 = arith.maximumf %8, %9 : vector<8x128xf32>
    %c0_7 = arith.constant 0 : index
    %c0_8 = arith.constant 0 : index
    %11 = vector.load %arg9[%c0_7, %c0_8] : memref<8x64xf32, #tpu.memory_space<vmem>>, vector<8x64xf32>
    %12 = arith.truncf %10 : vector<8x128xf32> to vector<8x128xbf16>
    %c0_9 = arith.constant 0 : index
    %c0_10 = arith.constant 0 : index
    %13 = vector.load %arg4[%c0_9, %c0_10] : memref<128x64xbf16, #tpu.memory_space<vmem>>, vector<128x64xbf16>
    %cst_11 = arith.constant dense<0.000000e+00> : vector<8x64xf32>
    %14 = tpu.matmul %12, %13, %cst_11 {dimension_numbers = #tpu.dot_dimension_numbers<[1], [0], [0], [1], [0, 0, 1, 1], [], []>} : vector<8x128xbf16>, vector<128x64xbf16>, vector<8x64xf32> -> vector<8x64xf32>
    %15 = arith.addf %11, %14 : vector<8x64xf32>
    %c0_12 = arith.constant 0 : index
    %c0_13 = arith.constant 0 : index
    %16 = vector.load %arg9[%c0_12, %c0_13] : memref<8x64xf32, #tpu.memory_space<vmem>>, vector<8x64xf32>
    tpu.vector_store %arg9[%c0_12, %c0_13], %15 {strides = array<i32>} : memref<8x64xf32, #tpu.memory_space<vmem>>, vector<8x64xf32>,
    %c0_i32_14 = arith.constant 0 : i32
    %17 = arith.cmpi eq, %arg0, %c0_i32_14 : i32
    %18 = arith.extui %17 : i1 to i32
    %c0_i32_15 = arith.constant 0 : i32
    %19 = arith.cmpi ne, %18, %c0_i32_15 : i32
    scf.if %19 {
      %c0_16 = arith.constant 0 : index
      %c0_17 = arith.constant 0 : index
      %20 = vector.load %arg9[%c0_16, %c0_17] : memref<8x64xf32, #tpu.memory_space<vmem>>, vector<8x64xf32>
      %c0_18 = arith.constant 0 : index
      %c0_19 = arith.constant 0 : index
      %21 = vector.load %arg5[%c0_18, %c0_19] : memref<1x64xf32, #tpu.memory_space<vmem>>, vector<1x64xf32>
      %22 = vector.broadcast %21 : vector<1x64xf32> to vector<8x64xf32>
      %23 = arith.addf %20, %22 : vector<8x64xf32>
      %cst_20 = arith.constant 0.000000e+00 : f32
      %24 = vector.broadcast %cst_20 : f32 to vector<8x64xf32>
      %25 = arith.maximumf %23, %24 : vector<8x64xf32>
      %26 = arith.truncf %25 : vector<8x64xf32> to vector<8x64xbf16>
      %c0_21 = arith.constant 0 : index
      %c0_22 = arith.constant 0 : index
      %27 = vector.load %arg6[%c0_21, %c0_22] : memref<64x128xbf16, #tpu.memory_space<vmem>>, vector<64x128xbf16>
      %cst_23 = arith.constant dense<0.000000e+00> : vector<8x128xf32>
      %28 = tpu.matmul %26, %27, %cst_23 {dimension_numbers = #tpu.dot_dimension_numbers<[1], [0], [0], [1], [0, 0, 1, 1], [], []>} : vector<8x64xbf16>, vector<64x128xbf16>, vector<8x128xf32> -> vector<8x128xf32>
      %c0_24 = arith.constant 0 : index
      %c0_25 = arith.constant 0 : index
      %29 = vector.load %arg7[%c0_24, %c0_25] : memref<1x128xf32, #tpu.memory_space<vmem>>, vector<1x128xf32>
      %30 = vector.broadcast %29 : vector<1x128xf32> to vector<8x128xf32>
      %31 = arith.addf %28, %30 : vector<8x128xf32>
      %c0_26 = arith.constant 0 : index
      %c0_27 = arith.constant 0 : index
      %32 = vector.load %arg8[%c0_26, %c0_27] : memref<8x128xf32, #tpu.memory_space<vmem>>, vector<8x128xf32>
      tpu.vector_store %arg8[%c0_26, %c0_27], %31 {strides = array<i32>} : memref<8x128xf32, #tpu.memory_space<vmem>>, vector<8x128xf32>,
    } else {
    }
    return
  }
  func.func @transform_0(%arg0: i32) -> (i32, i32) {
    %c0_i32 = arith.constant 0 : i32
    %c0_i32_0 = arith.constant 0 : i32
    %c0_i32_1 = arith.constant 0 : i32
    return %c0_i32, %c0_i32_0 : i32, i32
  }
  func.func @transform_1(%arg0: i32) -> (i32, i32) {
    %c0_i32 = arith.constant 0 : i32
    %c0_i32_0 = arith.constant 0 : i32
    return %c0_i32, %arg0 : i32, i32
  }
  func.func @transform_2(%arg0: i32) -> (i32, i32) {
    %c0_i32 = arith.constant 0 : i32
    %c0_i32_0 = arith.constant 0 : i32
    return %c0_i32, %arg0 : i32, i32
  }
  func.func @transform_3(%arg0: i32) -> (i32, i32) {
    %c0_i32 = arith.constant 0 : i32
    %c0_i32_0 = arith.constant 0 : i32
    return %arg0, %c0_i32 : i32, i32
  }
  func.func @transform_4(%arg0: i32) -> (i32, i32) {
    %c0_i32 = arith.constant 0 : i32
    %c0_i32_0 = arith.constant 0 : i32
    %c0_i32_1 = arith.constant 0 : i32
    return %c0_i32, %c0_i32_0 : i32, i32
  }
  func.func @transform_5(%arg0: i32) -> (i32, i32) {
    %c0_i32 = arith.constant 0 : i32
    %c0_i32_0 = arith.constant 0 : i32
    %c0_i32_1 = arith.constant 0 : i32
    return %c0_i32, %c0_i32_0 : i32, i32
  }
  func.func @transform_6(%arg0: i32) -> (i32, i32) {
    %c0_i32 = arith.constant 0 : i32
    %c0_i32_0 = arith.constant 0 : i32
    %c0_i32_1 = arith.constant 0 : i32
    return %c0_i32, %c0_i32_0 : i32, i32
  }
  func.func @transform_7(%arg0: i32) -> (i32, i32) {
    %c0_i32 = arith.constant 0 : i32
    %c0_i32_0 = arith.constant 0 : i32
    %c0_i32_1 = arith.constant 0 : i32
    return %c0_i32, %c0_i32_0 : i32, i32
  }
}

</mosaic_0001>

<llo_original>
// kernel: roberta_classification_head.1
$region0: #{roberta_classification_head.1}
  #allocation0 [shape = 'u32[]', space=smem, size = 0x4, offset = 0x4, fixed_abs, tag = 'smem constant byte address 0x4 - core index']
  #allocation1 [shape = 'u32[72,128]{1,0:T(1,128)}', space=vmem, size = 0x9000, scoped, tag = 'internal scratch']
  #allocation2 [shape = 'f32[8,64]{1,0:T(8,128)}', space=vmem, size = 0x1000, scoped, tag = 'scratch operand']
  %s0 = inlined_call_operand.vmem [shape: bf16[8,64], index: 0, kind: input, shape index: {}]
  %s1 = inlined_call_operand.vmem [shape: bf16[64,128], index: 1, kind: input, shape index: {}]
  %s2 = inlined_call_operand.vmem [shape: f32[1,128], index: 2, kind: input, shape index: {}]
  %s3 = inlined_call_operand.vmem [shape: bf16[128,64], index: 3, kind: input, shape index: {}]
  %s4 = inlined_call_operand.vmem [shape: f32[1,64], index: 4, kind: input, shape index: {}]
  %s5 = inlined_call_operand.vmem [shape: bf16[64,128], index: 5, kind: input, shape index: {}]
  %s6 = inlined_call_operand.vmem [shape: f32[1,128], index: 6, kind: input, shape index: {}]
  %s7 = inlined_call_operand.vmem [shape: f32[8,128], index: 7, kind: output, shape index: {}]
  %s8 = sld [smem:[#allocation0]]
  $region46: #{roberta_classification_head.1} parent=0
    _
  %s10 = ssub.s32 1, %s8
  %s11 = scalar_select 0, %s10, %s8
  // Predicated region
  $region2: #{roberta_classification_head.1} parent=0 // pred_check
    _
  $region3: #{roberta_classification_head.1} parent=0 // pred_check_branch
    %13 = sbr.rel (0) target = $region5
  $region4: #{roberta_classification_head.1} parent=0 // pred_region
    _
  $region5: #{roberta_classification_head.1} parent=0 // pred_fallthru
    _
  // Predicated region
  $region6: #{roberta_classification_head.1} parent=0 // pred_check
    _
  $region7: #{roberta_classification_head.1} parent=0 // pred_check_branch
    %15 = sbr.rel (0) target = $region9
  $region8: #{roberta_classification_head.1} parent=0 // pred_region
    _
  $region9: #{roberta_classification_head.1} parent=0 // pred_fallthru
    _
  // Predicated region
  $region10: #{roberta_classification_head.1} parent=0 // pred_check
    _
  $region11: #{roberta_classification_head.1} parent=0 // pred_check_branch
    %17 = sbr.rel (0) target = $region13
  $region12: #{roberta_classification_head.1} parent=0 // pred_region
    _
  $region13: #{roberta_classification_head.1} parent=0 // pred_fallthru
    _
  // Predicated region
  $region14: #{roberta_classification_head.1} parent=0 // pred_check
    _
  $region15: #{roberta_classification_head.1} parent=0 // pred_check_branch
    %19 = sbr.rel (0) target = $region17
  $region16: #{roberta_classification_head.1} parent=0 // pred_region
    _
  $region17: #{roberta_classification_head.1} parent=0 // pred_fallthru
    _
  // Predicated region
  $region18: #{roberta_classification_head.1} parent=0 // pred_check
    _
  $region19: #{roberta_classification_head.1} parent=0 // pred_check_branch
    %21 = sbr.rel (0) target = $region21
  $region20: #{roberta_classification_head.1} parent=0 // pred_region
    _
  $region21: #{roberta_classification_head.1} parent=0 // pred_fallthru
    _
  // Predicated region
  $region22: #{roberta_classification_head.1} parent=0 // pred_check
    _
  $region23: #{roberta_classification_head.1} parent=0 // pred_check_branch
    %23 = sbr.rel (0) target = $region25
  $region24: #{roberta_classification_head.1} parent=0 // pred_region
    _
  $region25: #{roberta_classification_head.1} parent=0 // pred_fallthru
    _
  // Predicated region
  $region26: #{roberta_classification_head.1} parent=0 // pred_check
    _
  $region27: #{roberta_classification_head.1} parent=0 // pred_check_branch
    %25 = sbr.rel (0) target = $region29
  $region28: #{roberta_classification_head.1} parent=0 // pred_region
    _
  $region29: #{roberta_classification_head.1} parent=0 // pred_fallthru
    _
  %p27 = scmp.eq.s32.totalorder 0, 0
  // Predicated region
  $region30: #{roberta_classification_head.1} parent=0 // pred_check
    %p28 = pneg %p27
  $region31: #{roberta_classification_head.1} parent=0 // pred_check_branch
    %30 = sbr.rel (%p28) target = $region33
  $region32: #{roberta_classification_head.1} parent=0 // pred_region
    %vm31 = vcmask 523264
    %32 = vst.msk [vmem:[#allocation2] sm:$0xff] %vm31, 0.0
  $region33: #{roberta_classification_head.1} parent=0 // pred_fallthru
    _
  %v33 = vld [vmem:[%s0] sm:$0xf]
  %v34 = vld [vmem:[%s1] sm:$0xf]
  %v35 = vld [vmem:[%s1 + $0x4] sm:$0xf]
  %v36 = vld [vmem:[%s1 + $0x8] sm:$0xf]
  %v37 = vld [vmem:[%s1 + $0xc] sm:$0xf]
  %v38 = vld [vmem:[%s1 + $0x10] sm:$0xf]
  %v39 = vld [vmem:[%s1 + $0x14] sm:$0xf]
  %v40 = vld [vmem:[%s1 + $0x18] sm:$0xf]
  %v41 = vld [vmem:[%s1 + $0x1c] sm:$0xf]
  %v42 = vld [vmem:[%s2] sm:$0x1]
  %v44 = vperm.slane %v42, 0
  %v54 = vunpack.c.l.b16 %v34
  %v55 = vunpack.c.l.b16 %v35
  %v56 = vunpack.c.l.b16 %v36
  %v57 = vunpack.c.l.b16 %v37
  %v58 = vunpack.c.l.b16 %v38
  %v59 = vunpack.c.l.b16 %v39
  %v60 = vunpack.c.l.b16 %v40
  %v61 = vunpack.c.l.b16 %v41
  %v62 = vpack.c.b16 %v55, %v54
  %v63 = vpack.c.b16 %v57, %v56
  %v64 = vpack.c.b16 %v59, %v58
  %v65 = vpack.c.b16 %v61, %v60
  %vm70 = vcmask 523264
  %v72 = vsel %vm70, %v33, 0
  %74 = vmatpush.bf16.msra.mxu0 0
  %75 = vmatpush.bf16.msra.mxu0 0
  %76 = vmatpush.bf16.msra.mxu0 0
  %77 = vmatpush.bf16.msra.mxu0 0
  %78 = vmatpush.bf16.msra.mxu0 %v65
  %79 = vmatpush.bf16.msra.mxu0 %v64
  %80 = vmatpush.bf16.msra.mxu0 %v63
  %81 = vmatpush.bf16.msra.mxu0 %v62
  %82 = vmatmul.bf16.gmra.mxu0 %v72
  %v83 = vpop.f32.mrf.mxu0
  %v84 = vadd.f32 %v44, %v83
  %v85 = vpop.f32.mrf.mxu0
  %86 = vdwg.mxu0
  %v87 = vmax.f32 %v84, 0.0
  %v88 = vld [vmem:[#allocation2] sm:$0xff]
  %v89 = vpack.c.bf16 %v87, %v87
  %v90 = vld [vmem:[%s3] sm:$0xf]
  %v91 = vld [vmem:[%s3 + $0x4] sm:$0xf]
  %v92 = vld [vmem:[%s3 + $0x8] sm:$0xf]
  %v93 = vld [vmem:[%s3 + $0xc] sm:$0xf]
  %v94 = vld [vmem:[%s3 + $0x10] sm:$0xf]
  %v95 = vld [vmem:[%s3 + $0x14] sm:$0xf]
  %v96 = vld [vmem:[%s3 + $0x18] sm:$0xf]
  %v97 = vld [vmem:[%s3 + $0x1c] sm:$0xf]
  %v98 = vld [vmem:[%s3 + $0x20] sm:$0xf]
  %v99 = vld [vmem:[%s3 + $0x24] sm:$0xf]
  %v100 = vld [vmem:[%s3 + $0x28] sm:$0xf]
  %v101 = vld [vmem:[%s3 + $0x2c] sm:$0xf]
  %v102 = vld [vmem:[%s3 + $0x30] sm:$0xf]
  %v103 = vld [vmem:[%s3 + $0x34] sm:$0xf]
  %v104 = vld [vmem:[%s3 + $0x38] sm:$0xf]
  %v105 = vld [vmem:[%s3 + $0x3c] sm:$0xf]
  %v122 = vunpack.c.l.b16 %v90
  %v123 = vunpack.c.l.b16 %v91
  %v124 = vunpack.c.l.b16 %v92
  %v125 = vunpack.c.l.b16 %v93
  %v126 = vunpack.c.l.b16 %v94
  %v127 = vunpack.c.l.b16 %v95
  %v128 = vunpack.c.l.b16 %v96
  %v129 = vunpack.c.l.b16 %v97
  %v130 = vunpack.c.l.b16 %v98
  %v131 = vunpack.c.l.b16 %v99
  %v132 = vunpack.c.l.b16 %v100
  %v133 = vunpack.c.l.b16 %v101
  %v134 = vunpack.c.l.b16 %v102
  %v135 = vunpack.c.l.b16 %v103
  %v136 = vunpack.c.l.b16 %v104
  %v137 = vunpack.c.l.b16 %v105
  %v138 = vpack.c.b16 %v123, %v122
  %v139 = vpack.c.b16 %v125, %v124
  %v140 = vpack.c.b16 %v127, %v126
  %v141 = vpack.c.b16 %v129, %v128
  %v142 = vpack.c.b16 %v131, %v130
  %v143 = vpack.c.b16 %v133, %v132
  %v144 = vpack.c.b16 %v135, %v134
  %v145 = vpack.c.b16 %v137, %v136
  %154 = vmatpush.bf16.msra.mxu0 %v145
  %155 = vmatpush.bf16.msra.mxu0 %v144
  %156 = vmatpush.bf16.msra.mxu0 %v143
  %157 = vmatpush.bf16.msra.mxu0 %v142
  %158 = vmatpush.bf16.msra.mxu0 %v141
  %159 = vmatpush.bf16.msra.mxu0 %v140
  %160 = vmatpush.bf16.msra.mxu0 %v139
  %161 = vmatpush.bf16.msra.mxu0 %v138
  %162 = vmatmul.bf16.gmra.mxu0 %v89
  %v163 = vpop.f32.mrf.mxu0
  %v164 = vadd.f32 0.0, %v163
  %v165 = vpop.f32.mrf.mxu0
  %166 = vdwg.mxu0
  %v167 = vadd.f32 %v88, %v164
  %168 = vst.msk [vmem:[#allocation2] sm:$0xff] %vm70, %v167
  // Predicated region
  $region34: #{roberta_classification_head.1} parent=0 // pred_check
    %p169 = pneg %p27
  $region35: #{roberta_classification_head.1} parent=0 // pred_check_branch
    %171 = sbr.rel (%p169) target = $region37
  $region36: #{roberta_classification_head.1} parent=0 // pred_region
    %v172 = vld [vmem:[#allocation2] sm:$0xff]
    %v173 = vld [vmem:[%s4] sm:$0x1]
    %v175 = vperm.slane %v173, 0
    %v177 = vadd.f32 %v172, %v175
    %v178 = vmax.f32 %v177, 0.0
    %v179 = vpack.c.bf16 %v178, %v178
    %v180 = vld [vmem:[%s5] sm:$0xf]
    %v181 = vld [vmem:[%s5 + $0x4] sm:$0xf]
    %v182 = vld [vmem:[%s5 + $0x8] sm:$0xf]
    %v183 = vld [vmem:[%s5 + $0xc] sm:$0xf]
    %v184 = vld [vmem:[%s5 + $0x10] sm:$0xf]
    %v185 = vld [vmem:[%s5 + $0x14] sm:$0xf]
    %v186 = vld [vmem:[%s5 + $0x18] sm:$0xf]
    %v187 = vld [vmem:[%s5 + $0x1c] sm:$0xf]
    %v188 = vld [vmem:[%s6] sm:$0x1]
    %v190 = vperm.slane %v188, 0
    %v200 = vunpack.c.l.b16 %v180
    %v201 = vunpack.c.l.b16 %v181
    %v202 = vunpack.c.l.b16 %v182
    %v203 = vunpack.c.l.b16 %v183
    %v204 = vunpack.c.l.b16 %v184
    %v205 = vunpack.c.l.b16 %v185
    %v206 = vunpack.c.l.b16 %v186
    %v207 = vunpack.c.l.b16 %v187
    %v208 = vpack.c.b16 %v201, %v200
    %v209 = vpack.c.b16 %v203, %v202
    %v210 = vpack.c.b16 %v205, %v204
    %v211 = vpack.c.b16 %v207, %v206
    %v217 = vsel %vm70, %v179, 0
    %219 = vmatpush.bf16.msra.mxu0 0
    %220 = vmatpush.bf16.msra.mxu0 0
    %221 = vmatpush.bf16.msra.mxu0 0
    %222 = vmatpush.bf16.msra.mxu0 0
    %223 = vmatpush.bf16.msra.mxu0 %v211
    %224 = vmatpush.bf16.msra.mxu0 %v210
    %225 = vmatpush.bf16.msra.mxu0 %v209
    %226 = vmatpush.bf16.msra.mxu0 %v208
    %227 = vmatmul.bf16.gmra.mxu0 %v217
    %v228 = vpop.f32.mrf.mxu0
    %v229 = vadd.f32 %v190, %v228
    %v230 = vpop.f32.mrf.mxu0
    %231 = vdwg.mxu0
    %232 = vst [vmem:[%s7] sm:$0xff] %v229
  $region37: #{roberta_classification_head.1} parent=0 // pred_fallthru
    _
  // Predicated region
  $region38: #{roberta_classification_head.1} parent=0 // pred_check
    _
  $region39: #{roberta_classification_head.1} parent=0 // pred_check_branch
    %234 = sbr.rel (0) target = $region41
  $region40: #{roberta_classification_head.1} parent=0 // pred_region
    _
  $region41: #{roberta_classification_head.1} parent=0 // pred_fallthru
    _
  // Predicated region
  $region42: #{roberta_classification_head.1} parent=0 // pred_check
    _
  $region43: #{roberta_classification_head.1} parent=0 // pred_check_branch
    %236 = sbr.rel (0) target = $region45
  $region44: #{roberta_classification_head.1} parent=0 // pred_region
    _
  $region45: #{roberta_classification_head.1} parent=0 // pred_fallthru
    _

</llo_original>
